<compile_context>
chip_gen: v7x
topology: tpu7x:2x2x1
jax: 0.10.0
libtpu: 0.0.40
codegen_flags: <defaults>
</compile_context>

<pallas_src>
import functools

import jax
import jax.numpy as jnp
from jax import lax
from jax.experimental import pallas as pl
from jax.experimental.pallas import tpu as pltpu


def _round_up(x, m):
    return ((x + m - 1) // m) * m


def _oicr_loss_kernel(prob_ref, labels_ref, w_ref, out_ref, acc_ref, *,
                      bg_balance, labels_one_hot, eps, c, k, n_pad_rows):
    pid = pl.program_id(0)
    nsteps = pl.num_programs(0)

    @pl.when(pid == 0)
    def _init():
        acc_ref[0] = jnp.float32(0.0)
        acc_ref[1] = jnp.float32(0.0)
        acc_ref[2] = jnp.float32(0.0)
        acc_ref[3] = jnp.float32(0.0)

    prob = prob_ref[...].astype(jnp.float32)      # (tn, k*C)
    labels = labels_ref[...].astype(jnp.float32)  # (tn, k*C)
    w = w_ref[...].astype(jnp.float32)            # (tn, k)

    kc = k * c
    # Tiny 0/1 selection matrices, built from iota (no HBM traffic).
    lane = lax.broadcasted_iota(jnp.int32, (kc, k), 0)
    grp = lax.broadcasted_iota(jnp.int32, (kc, k), 1)
    seg_lo = grp * c
    # s_seg[i, j] = 1 iff lane i belongs to packed proposal j (segment sum).
    s_seg = ((lane >= seg_lo) & (lane < seg_lo + c)).astype(jnp.float32)

    if labels_one_hot:
        # Exact only for strictly one-hot labels: N logs instead of N*C.
        picked = jnp.dot(labels * prob, s_seg,
                         preferred_element_type=jnp.float32,
                         precision=lax.Precision.HIGHEST)          # (tn, k)
        row_loss = jnp.log(picked + eps)
    else:
        row_loss = jnp.dot(labels * jnp.log(prob + eps), s_seg,
                           preferred_element_type=jnp.float32,
                           precision=lax.Precision.HIGHEST)        # (tn, k)

    weighted = row_loss * w                                        # (tn, k)

    if not bg_balance:
        acc_ref[0] += -jnp.sum(weighted)
        # Padded rows have w == 0 and therefore do not count.
        acc_ref[1] += jnp.sum((w != 0.0).astype(jnp.float32))
    else:
        # labels[:, 0] of every packed proposal via a second tiny MXU matmul.
        s_col0 = (lane == seg_lo).astype(jnp.float32)              # (kc, k)
        col0 = jnp.dot(labels, s_col0,
                       preferred_element_type=jnp.float32,
                       precision=lax.Precision.HIGHEST)            # (tn, k)
        fg = (col0 > 0.0).astype(jnp.float32)
        bg = (col0 == 0.0).astype(jnp.float32)   # reference semantics (== 0)
        acc_ref[0] += -jnp.sum(weighted * fg)
        acc_ref[1] += -jnp.sum(weighted * bg)
        acc_ref[2] += jnp.sum(fg)
        acc_ref[3] += jnp.sum(bg)

    @pl.when(pid == nsteps - 1)
    def _finalize():
        # Divides by raw counts, matching the PyTorch module (inf/nan possible
        # if a partition is empty, exactly like the reference).
        if not bg_balance:
            out_ref[0, 0] = acc_ref[0] / acc_ref[1]
        else:
            # Padded rows look like background; subtract the constant count.
            bg_cnt = acc_ref[3] - jnp.float32(n_pad_rows)
            out_ref[0, 0] = acc_ref[0] / acc_ref[2] + acc_ref[1] / bg_cnt


def oicr_losses_balanced(prob, labels_ic, cls_loss_weights, bg_balance=False,
                         labels_one_hot=False, eps=1e-6, max_block_rows=2048):
    """Pallas implementation of OICRLosses_Balanced.forward -> scalar loss.

    labels_one_hot=True enables the cheaper row_loss = log(sum(labels*prob)+eps)
    path; it is mathematically identical only when every labels_ic row has
    exactly one entry equal to 1 (the standard OICR pseudo-label case).
    """
    n, c = prob.shape

    # Lane packing: k proposals per 128-lane row (k=6 for C=21, k=5 for C=24).
    k = max(1, 128 // c) if c <= 128 else 1
    packed_c = k * c

    def _sublane(dt):
        return {4: 8, 2: 16, 1: 32}.get(jnp.dtype(dt).itemsize, 8)
    sub = max(_sublane(prob.dtype), _sublane(labels_ic.dtype))

    np_needed = -(-n // k)                       # packed rows needed
    cap = max(sub, (int(max_block_rows) // sub) * sub)
    if np_needed <= cap:
        tn = _round_up(np_needed, sub)           # single grid step (common case)
        np_total = tn
    else:
        tn = cap                                  # tile cap keeps 2 inputs x
        np_total = _round_up(np_needed, tn)       # 2 buffers well inside VMEM
    grid = np_total // tn

    n_pad = np_total * k - n
    if n_pad:
        # Neutral padding: labels=0 (zero loss term), w=0 (zero weight, not in
        # valid_num), prob=1 (finite log).  Padded rows still look like bg; the
        # kernel subtracts the constant pad count from the bg count.
        prob = jnp.pad(prob, ((0, n_pad), (0, 0)), constant_values=1)
        labels_ic = jnp.pad(labels_ic, ((0, n_pad), (0, 0)), constant_values=0)
        cls_loss_weights = jnp.pad(cls_loss_weights, ((0, n_pad),),
                                   constant_values=0)

    # Contiguous row-major reshapes (lane-dense tiles for DMA and VPU/EUP).
    prob_p = prob.reshape(np_total, packed_c)
    labels_p = labels_ic.reshape(np_total, packed_c)
    w_p = cls_loss_weights.reshape(np_total, k)

    kernel = functools.partial(
        _oicr_loss_kernel, bg_balance=bg_balance,
        labels_one_hot=labels_one_hot, eps=eps, c=c, k=k, n_pad_rows=n_pad)

    in_bytes = (prob_p.size * prob_p.dtype.itemsize
                + labels_p.size * labels_p.dtype.itemsize
                + w_p.size * w_p.dtype.itemsize)
    n_mm = 2 if bg_balance else 1
    cost = pl.CostEstimate(
        flops=2 * np_total * packed_c * k * n_mm + 6 * np_total * packed_c,
        transcendentals=np_total * (k if labels_one_hot else packed_c),
        bytes_accessed=in_bytes + 4)

    out = pl.pallas_call(
        kernel,
        out_shape=jax.ShapeDtypeStruct((1, 1), jnp.float32),
        grid_spec=pltpu.PrefetchScalarGridSpec(
            num_scalar_prefetch=0,
            grid=(grid,),
            in_specs=[
                pl.BlockSpec((tn, packed_c), lambda i: (i, 0)),   # prob
                pl.BlockSpec((tn, packed_c), lambda i: (i, 0)),   # labels_ic
                pl.BlockSpec((tn, k), lambda i: (i, 0)),          # weights
            ],
            out_specs=pl.BlockSpec(memory_space=pltpu.SMEM),
            scratch_shapes=[pltpu.SMEM((4,), jnp.float32)],
        ),
        compiler_params=pltpu.CompilerParams(
            # Shared SMEM accumulator across the reduction axis -> "arbitrary".
            dimension_semantics=("arbitrary",)),
        cost_estimate=cost,
    )(prob_p, labels_p, w_p)
    return out[0, 0]


def _reference(prob, labels_ic, cls_loss_weights, bg_balance=False, eps=1e-6):
    """Plain-JAX reference mirroring the PyTorch forward."""
    logp = jnp.log(prob + eps)
    row = jnp.sum(labels_ic * logp, axis=1)
    if not bg_balance:
        valid_num = jnp.sum(cls_loss_weights != 0.0)
        return jnp.sum(-cls_loss_weights * row) / valid_num
    col0 = labels_ic[:, 0]
    mask_fg = (col0 > 0.0).astype(jnp.float32)
    mask_bg = (col0 == 0.0).astype(jnp.float32)
    fg_num = jnp.sum(mask_fg)
    bg_num = jnp.sum(mask_bg)
    loss_fg = jnp.sum(-row * cls_loss_weights * mask_fg) / fg_num
    loss_bg = jnp.sum(-row * cls_loss_weights * mask_bg) / bg_num
    return loss_bg + loss_fg


if __name__ == "__main__":
    root = jax.random.PRNGKey(0)

    def make_inputs(key, n, c, dtype):
        k1, k2, k3 = jax.random.split(key, 3)
        logits = jax.random.normal(k1, (n, c), dtype=jnp.float32)
        prob = jax.nn.softmax(logits, axis=1).astype(dtype)
        cls_idx = jax.random.randint(k2, (n,), 0, c)
        cls_idx = cls_idx.at[0].set(0).at[1].set(1)   # guarantee >=1 bg and fg row
        labels = jax.nn.one_hot(cls_idx, c, dtype=dtype)
        w = jax.random.uniform(k3, (n,), dtype=jnp.float32,
                               minval=0.1, maxval=1.0)
        return prob, labels, w

    # (name, N, C, dtype, max_block_rows)
    cases = [
        ("small_f32", 16, 24, jnp.float32, 2048),
        ("small_bf16", 16, 24, jnp.bfloat16, 2048),     # native-dtype DMA path
        ("packed_f32", 300, 21, jnp.float32, 2048),     # k=6 lane packing, grid=1
        ("multistep_f32", 300, 21, jnp.float32, 24),    # forced grid>1 + pad tail
    ]

    ok = True
    key = root
    for name, n, c, dtype, mbr in cases:
        key, subkey = jax.random.split(key)
        prob, labels, w = make_inputs(subkey, n, c, dtype)
        ref_p = prob.astype(jnp.float32)
        ref_l = labels.astype(jnp.float32)
        for bg_balance in (False, True):
            ref = _reference(ref_p, ref_l, w, bg_balance=bg_balance)
            for one_hot in (False, True):
                out = oicr_losses_balanced(prob, labels, w,
                                           bg_balance=bg_balance,
                                           labels_one_hot=one_hot,
                                           max_block_rows=mbr)
                out = jax.block_until_ready(out)
                if not jnp.allclose(out, ref, rtol=1e-4, atol=1e-5):
                    ok = False
                    print(f"MISMATCH {name} bg_balance={bg_balance} "
                          f"one_hot={one_hot}: pallas={out} ref={ref}")

    if ok:
        print("KERNEL_OK")
</pallas_src>

<mosaic_0001>
module attributes {stable_mosaic.version = 11 : i64} {
  func.func @_oicr_loss_kernel(%arg0: i32, %arg1: memref<8x120xf32, #tpu.memory_space<vmem>>, %arg2: memref<8x120xf32, #tpu.memory_space<vmem>>, %arg3: memref<8x5xf32, #tpu.memory_space<vmem>>, %arg4: memref<1x1xf32, #tpu.memory_space<smem>>, %arg5: memref<4xf32, #tpu.memory_space<smem>>) attributes {dimension_semantics = [#tpu.dimension_semantics<arbitrary>], iteration_bounds = array<i64: 1>, scalar_prefetch = 0 : i64, scratch_operands = 1 : i64, tpu.core_type = #tpu.core_type<tc>, window_params = [{transform_indices = @transform_0, window_bounds = array<i64: 8, 120>}, {transform_indices = @transform_1, window_bounds = array<i64: 8, 120>}, {transform_indices = @transform_2, window_bounds = array<i64: 8, 5>}, {transform_indices = @transform_3, window_bounds = array<i64: 1, 1>}]} {
    %c0_i32 = arith.constant 0 : i32
    %0 = arith.cmpi eq, %arg0, %c0_i32 : i32
    %1 = arith.extui %0 : i1 to i32
    %c0_i32_0 = arith.constant 0 : i32
    %2 = arith.cmpi ne, %1, %c0_i32_0 : i32
    scf.if %2 {
      %cst_17 = arith.constant 0.000000e+00 : f32
      %c0_18 = arith.constant 0 : index
      %45 = memref.load %arg5[%c0_18] : memref<4xf32, #tpu.memory_space<smem>>
      memref.store %cst_17, %arg5[%c0_18] : memref<4xf32, #tpu.memory_space<smem>>
      %cst_19 = arith.constant 0.000000e+00 : f32
      %c1_20 = arith.constant 1 : index
      %46 = memref.load %arg5[%c1_20] : memref<4xf32, #tpu.memory_space<smem>>
      memref.store %cst_19, %arg5[%c1_20] : memref<4xf32, #tpu.memory_space<smem>>
      %cst_21 = arith.constant 0.000000e+00 : f32
      %c2 = arith.constant 2 : index
      %47 = memref.load %arg5[%c2] : memref<4xf32, #tpu.memory_space<smem>>
      memref.store %cst_21, %arg5[%c2] : memref<4xf32, #tpu.memory_space<smem>>
      %cst_22 = arith.constant 0.000000e+00 : f32
      %c3 = arith.constant 3 : index
      %48 = memref.load %arg5[%c3] : memref<4xf32, #tpu.memory_space<smem>>
      memref.store %cst_22, %arg5[%c3] : memref<4xf32, #tpu.memory_space<smem>>
    } else {
    }
    %c0 = arith.constant 0 : index
    %c0_1 = arith.constant 0 : index
    %3 = vector.load %arg1[%c0, %c0_1] : memref<8x120xf32, #tpu.memory_space<vmem>>, vector<8x120xf32>
    %c0_2 = arith.constant 0 : index
    %c0_3 = arith.constant 0 : index
    %4 = vector.load %arg2[%c0_2, %c0_3] : memref<8x120xf32, #tpu.memory_space<vmem>>, vector<8x120xf32>
    %c0_4 = arith.constant 0 : index
    %c0_5 = arith.constant 0 : index
    %5 = vector.load %arg3[%c0_4, %c0_5] : memref<8x5xf32, #tpu.memory_space<vmem>>, vector<8x5xf32>
    %6 = tpu.iota {dimensions = array<i32: 0>} : vector<120x5xi32>
    %7 = tpu.iota {dimensions = array<i32: 1>} : vector<120x5xi32>
    %c24_i32 = arith.constant 24 : i32
    %8 = vector.broadcast %c24_i32 : i32 to vector<120x5xi32>
    %9 = arith.muli %7, %8 : vector<120x5xi32>
    %10 = arith.cmpi sge, %6, %9 : vector<120x5xi32>
    %c24_i32_6 = arith.constant 24 : i32
    %11 = vector.broadcast %c24_i32_6 : i32 to vector<120x5xi32>
    %12 = arith.addi %9, %11 : vector<120x5xi32>
    %13 = arith.cmpi slt, %6, %12 : vector<120x5xi32>
    %14 = arith.andi %10, %13 : vector<120x5xi1>
    %15 = arith.extui %14 : vector<120x5xi1> to vector<120x5xi32>
    %16 = arith.sitofp %15 : vector<120x5xi32> to vector<120x5xf32>
    %cst = arith.constant 9.99999997E-7 : f32
    %17 = vector.broadcast %cst : f32 to vector<8x120xf32>
    %18 = arith.addf %3, %17 : vector<8x120xf32>
    %19 = math.log %18 : vector<8x120xf32>
    %20 = arith.mulf %4, %19 : vector<8x120xf32>
    %cst_7 = arith.constant dense<0.000000e+00> : vector<8x5xf32>
    %21 = tpu.matmul %20, %16, %cst_7 {dimension_numbers = #tpu.dot_dimension_numbers<[1], [0], [0], [1], [0, 0, 1, 1], [], []>, precision = #tpu.contract_precision<fp32>} : vector<8x120xf32>, vector<120x5xf32>, vector<8x5xf32> -> vector<8x5xf32>
    %22 = arith.mulf %21, %5 : vector<8x5xf32>
    %c0_8 = arith.constant 0 : index
    %23 = memref.load %arg5[%c0_8] : memref<4xf32, #tpu.memory_space<smem>>
    %24 = vector.shape_cast %22 : vector<8x5xf32> to vector<1x8x5xf32>
    %cst_9 = arith.constant dense<0.000000e+00> : vector<1xf32>
    %25 = vector.multi_reduction <add>, %24, %cst_9 [1, 2] : vector<1x8x5xf32> to vector<1xf32>
    %26 = vector.shape_cast %25 : vector<1xf32> to vector<1x1x1xf32>
    %27 = vector.extract %26[0, 0, 0] : f32 from vector<1x1x1xf32>
    %cst_10 = arith.constant 0.000000e+00 : f32
    %28 = arith.subf %cst_10, %27 : f32
    %29 = arith.addf %23, %28 : f32
    %c0_11 = arith.constant 0 : index
    %30 = memref.load %arg5[%c0_11] : memref<4xf32, #tpu.memory_space<smem>>
    memref.store %29, %arg5[%c0_11] : memref<4xf32, #tpu.memory_space<smem>>
    %c1 = arith.constant 1 : index
    %31 = memref.load %arg5[%c1] : memref<4xf32, #tpu.memory_space<smem>>
    %cst_12 = arith.constant 0.000000e+00 : f32
    %32 = vector.broadcast %cst_12 : f32 to vector<8x5xf32>
    %33 = arith.cmpf one, %5, %32 : vector<8x5xf32>
    %34 = arith.extui %33 : vector<8x5xi1> to vector<8x5xi32>
    %35 = arith.sitofp %34 : vector<8x5xi32> to vector<8x5xf32>
    %36 = vector.shape_cast %35 : vector<8x5xf32> to vector<1x8x5xf32>
    %cst_13 = arith.constant dense<0.000000e+00> : vector<1xf32>
    %37 = vector.multi_reduction <add>, %36, %cst_13 [1, 2] : vector<1x8x5xf32> to vector<1xf32>
    %38 = vector.shape_cast %37 : vector<1xf32> to vector<1x1x1xf32>
    %39 = vector.extract %38[0, 0, 0] : f32 from vector<1x1x1xf32>
    %40 = arith.addf %31, %39 : f32
    %c1_14 = arith.constant 1 : index
    %41 = memref.load %arg5[%c1_14] : memref<4xf32, #tpu.memory_space<smem>>
    memref.store %40, %arg5[%c1_14] : memref<4xf32, #tpu.memory_space<smem>>
    %c0_i32_15 = arith.constant 0 : i32
    %42 = arith.cmpi eq, %arg0, %c0_i32_15 : i32
    %43 = arith.extui %42 : i1 to i32
    %c0_i32_16 = arith.constant 0 : i32
    %44 = arith.cmpi ne, %43, %c0_i32_16 : i32
    scf.if %44 {
      %c0_17 = arith.constant 0 : index
      %45 = memref.load %arg5[%c0_17] : memref<4xf32, #tpu.memory_space<smem>>
      %c1_18 = arith.constant 1 : index
      %46 = memref.load %arg5[%c1_18] : memref<4xf32, #tpu.memory_space<smem>>
      %47 = arith.divf %45, %46 : f32
      %c0_19 = arith.constant 0 : index
      %c0_20 = arith.constant 0 : index
      %48 = memref.load %arg4[%c0_19, %c0_20] : memref<1x1xf32, #tpu.memory_space<smem>>
      memref.store %47, %arg4[%c0_19, %c0_20] : memref<1x1xf32, #tpu.memory_space<smem>>
    } else {
    }
    return
  }
  func.func @transform_0(%arg0: i32) -> (i32, i32) {
    %c0_i32 = arith.constant 0 : i32
    %c0_i32_0 = arith.constant 0 : i32
    return %arg0, %c0_i32 : i32, i32
  }
  func.func @transform_1(%arg0: i32) -> (i32, i32) {
    %c0_i32 = arith.constant 0 : i32
    %c0_i32_0 = arith.constant 0 : i32
    return %arg0, %c0_i32 : i32, i32
  }
  func.func @transform_2(%arg0: i32) -> (i32, i32) {
    %c0_i32 = arith.constant 0 : i32
    %c0_i32_0 = arith.constant 0 : i32
    return %arg0, %c0_i32 : i32, i32
  }
  func.func @transform_3(%arg0: i32) -> (i32, i32) {
    %c0_i32 = arith.constant 0 : i32
    %c0_i32_0 = arith.constant 0 : i32
    %c0_i32_1 = arith.constant 0 : i32
    return %c0_i32, %c0_i32_0 : i32, i32
  }
}

</mosaic_0001>

<llo_original>
// kernel: tpu_custom_call.1
$region0: #{tpu_custom_call.1}
  #allocation0 [shape = 'u32[]', space=smem, size = 0x4, offset = 0x4, fixed_abs, tag = 'smem constant byte address 0x4 - core index']
  #allocation1 [shape = 'u32[144,128]{1,0:T(1,128)}', space=vmem, size = 0x12000, scoped, tag = 'internal scratch']
  #allocation2 [shape = 'f32[4]{0:T(128)}', space=smem, size = 0x200, scoped, tag = 'scratch operand']
  %s0 = inlined_call_operand.hbm [shape: f32[8,120], index: 0, kind: input, shape index: {}]
  %s1 = inlined_call_operand.hbm [shape: f32[8,120], index: 1, kind: input, shape index: {}]
  %s2 = inlined_call_operand.hbm [shape: f32[8,5], index: 2, kind: input, shape index: {}]
  %s3 = inlined_call_operand.hbm [shape: f32[1,1], index: 3, kind: output, shape index: {}]
  %s4 = sld [smem:[#allocation0]]
  $region42: #{tpu_custom_call.1} parent=0
    _
  %s6 = ssub.s32 1, %s4
  %s7 = scalar_select 0, %s6, %s4
  $region1: #{tpu_custom_call.1} parent=0
    #allocation3 [shape = 'u8[4096]{0}', space=vmem, size = 0x1000, scoped, tag = 'input window, operand 0, single buffered']
    #allocation4 [shape = 's32[1]{0}', space=sflag, size = 0x4, scoped, tag = 'scoped memory for tpu_custom_call.1']
    #allocation5 [shape = 's32[1]{0}', space=sflag, size = 0x4, scoped, tag = 'scoped memory for tpu_custom_call.1']
    #allocation6 [shape = 'u8[4096]{0}', space=vmem, size = 0x1000, scoped, tag = 'input window, operand 1, single buffered']
    #allocation7 [shape = 's32[1]{0}', space=sflag, size = 0x4, scoped, tag = 'scoped memory for tpu_custom_call.1']
    #allocation8 [shape = 'u8[4096]{0}', space=vmem, size = 0x1000, scoped, tag = 'input window, operand 2, single buffered']
    #allocation9 [shape = 'u8[512]{0}', space=smem, size = 0x200, scoped, tag = 'output window, operand 0, single buffered']
    %8 = vsyncpa [#allocation4], 0
    %9 = vsyncpa [#allocation7], 0
    %10 = vsyncpa [#allocation5], 0
    // Predicated region
    $region2: #{tpu_custom_call.1} parent=1 // pred_check
      _
    $region3: #{tpu_custom_call.1} parent=1 // pred_check_branch
      %12 = sbr.rel (0) target = $region5
    $region4: #{tpu_custom_call.1} parent=1 // pred_region
      %s14 = ssub.s32 128, 128
      %15 = vsyncadd [#allocation4], %s14
      %s17 = sshll.u32 [#allocation3], 4
      %s18 = int_to_ptr.vmem [resolvable:$true] %s17
      %20 = dma.hbm_to_vmem [thread:$0]  %s0, 128, %s18, [#allocation4]
    $region5: #{tpu_custom_call.1} parent=1 // pred_fallthru
      _
    // Predicated region
    $region6: #{tpu_custom_call.1} parent=1 // pred_check
      _
    $region7: #{tpu_custom_call.1} parent=1 // pred_check_branch
      %22 = sbr.rel (0) target = $region9
    $region8: #{tpu_custom_call.1} parent=1 // pred_region
      %s24 = ssub.s32 128, 128
      %25 = vsyncadd [#allocation7], %s24
      %s27 = sshll.u32 [#allocation6], 4
      %s28 = int_to_ptr.vmem [resolvable:$true] %s27
      %30 = dma.hbm_to_vmem [thread:$0]  %s1, 128, %s28, [#allocation7]
    $region9: #{tpu_custom_call.1} parent=1 // pred_fallthru
      _
    // Predicated region
    $region10: #{tpu_custom_call.1} parent=1 // pred_check
      _
    $region11: #{tpu_custom_call.1} parent=1 // pred_check_branch
      %32 = sbr.rel (0) target = $region13
    $region12: #{tpu_custom_call.1} parent=1 // pred_region
      %s34 = ssub.s32 128, 128
      %35 = vsyncadd [#allocation7], %s34
      %s37 = sshll.u32 [#allocation8], 4
      %s38 = int_to_ptr.vmem [resolvable:$true] %s37
      %40 = dma.hbm_to_vmem [thread:$0]  %s2, 128, %s38, [#allocation7]
    $region13: #{tpu_custom_call.1} parent=1 // pred_fallthru
      _
    // Predicated region
    $region14: #{tpu_custom_call.1} parent=1 // pred_check
      _
    $region15: #{tpu_custom_call.1} parent=1 // pred_check_branch
      %42 = sbr.rel (0) target = $region17
    $region16: #{tpu_custom_call.1} parent=1 // pred_region
      %43 = dma.done [#allocation4], 128
    $region17: #{tpu_custom_call.1} parent=1 // pred_fallthru
      _
    // Predicated region
    $region18: #{tpu_custom_call.1} parent=1 // pred_check
      _
    $region19: #{tpu_custom_call.1} parent=1 // pred_check_branch
      %45 = sbr.rel (0) target = $region21
    $region20: #{tpu_custom_call.1} parent=1 // pred_region
      %46 = dma.done [#allocation7], 128
    $region21: #{tpu_custom_call.1} parent=1 // pred_fallthru
      _
    // Predicated region
    $region22: #{tpu_custom_call.1} parent=1 // pred_check
      _
    $region23: #{tpu_custom_call.1} parent=1 // pred_check_branch
      %48 = sbr.rel (0) target = $region25
    $region24: #{tpu_custom_call.1} parent=1 // pred_region
      %49 = dma.done [#allocation7], 128
    $region25: #{tpu_custom_call.1} parent=1 // pred_fallthru
      _
    %p50 = scmp.eq.s32.totalorder 0, 0
    // Predicated region
    $region26: #{tpu_custom_call.1} parent=1 // pred_check
      %p51 = pneg %p50
    $region27: #{tpu_custom_call.1} parent=1 // pred_check_branch
      %53 = sbr.rel (%p51) target = $region29
    $region28: #{tpu_custom_call.1} parent=1 // pred_region
      %s54 = scalar_lea.smem [#allocation2], 0
      %55 = sst [smem:[%s54]] 0.0
      %s56 = scalar_lea.smem [#allocation2], 1
      %57 = sst [smem:[%s56]] 0.0
      %s58 = scalar_lea.smem [#allocation2], 2
      %59 = sst [smem:[%s58]] 0.0
      %s60 = scalar_lea.smem [#allocation2], 3
      %61 = sst [smem:[%s60]] 0.0
    $region29: #{tpu_custom_call.1} parent=1 // pred_fallthru
      _
    %v62 = vld [vmem:[#allocation3] sm:$0xff]
    %v63 = vld [vmem:[#allocation6] sm:$0xff]
    %v64 = vld [vmem:[#allocation8] sm:$0xff]
    %v65 = vlaneseq
    %v66 = vshrl.u32 %v65, 7
    %v67 = vadd.s32 %v66, 8
    %v68 = vadd.s32 %v66, 16
    %v69 = vadd.s32 %v66, 24
    %v70 = vadd.s32 %v66, 32
    %v71 = vadd.s32 %v66, 40
    %v72 = vadd.s32 %v66, 48
    %v73 = vadd.s32 %v66, 56
    %v74 = vadd.s32 %v66, 64
    %v75 = vadd.s32 %v66, 72
    %v76 = vadd.s32 %v66, 80
    %v77 = vadd.s32 %v66, 88
    %v78 = vadd.s32 %v66, 96
    %v79 = vadd.s32 %v66, 104
    %v80 = vadd.s32 %v66, 112
    %v81 = vlaneseq
    %v82 = vand.u32 %v81, 127
    %v83 = vmul.u32 %v82, 24
    %vm84 = vcmp.ge.s32.totalorder %v66, %v83
    %vm85 = vcmp.ge.s32.totalorder %v67, %v83
    %vm86 = vcmp.ge.s32.totalorder %v68, %v83
    %vm87 = vcmp.ge.s32.totalorder %v69, %v83
    %vm88 = vcmp.ge.s32.totalorder %v70, %v83
    %vm89 = vcmp.ge.s32.totalorder %v71, %v83
    %vm90 = vcmp.ge.s32.totalorder %v72, %v83
    %vm91 = vcmp.ge.s32.totalorder %v73, %v83
    %vm92 = vcmp.ge.s32.totalorder %v74, %v83
    %vm93 = vcmp.ge.s32.totalorder %v75, %v83
    %vm94 = vcmp.ge.s32.totalorder %v76, %v83
    %vm95 = vcmp.ge.s32.totalorder %v77, %v83
    %vm96 = vcmp.ge.s32.totalorder %v78, %v83
    %vm97 = vcmp.ge.s32.totalorder %v79, %v83
    %vm98 = vcmp.ge.s32.totalorder %v80, %v83
    %v99 = vadd.s32 %v83, 24
    %vm100 = vcmp.lt.s32.totalorder %v66, %v99
    %vm101 = vcmp.lt.s32.totalorder %v67, %v99
    %vm102 = vcmp.lt.s32.totalorder %v68, %v99
    %vm103 = vcmp.lt.s32.totalorder %v69, %v99
    %vm104 = vcmp.lt.s32.totalorder %v70, %v99
    %vm105 = vcmp.lt.s32.totalorder %v71, %v99
    %vm106 = vcmp.lt.s32.totalorder %v72, %v99
    %vm107 = vcmp.lt.s32.totalorder %v73, %v99
    %vm108 = vcmp.lt.s32.totalorder %v74, %v99
    %vm109 = vcmp.lt.s32.totalorder %v75, %v99
    %vm110 = vcmp.lt.s32.totalorder %v76, %v99
    %vm111 = vcmp.lt.s32.totalorder %v77, %v99
    %vm112 = vcmp.lt.s32.totalorder %v78, %v99
    %vm113 = vcmp.lt.s32.totalorder %v79, %v99
    %vm114 = vcmp.lt.s32.totalorder %v80, %v99
    %vm115 = vmand %vm84, %vm100
    %vm116 = vmand %vm85, %vm101
    %vm117 = vmand %vm86, %vm102
    %vm118 = vmand %vm87, %vm103
    %vm119 = vmand %vm88, %vm104
    %vm120 = vmand %vm89, %vm105
    %vm121 = vmand %vm90, %vm106
    %vm122 = vmand %vm91, %vm107
    %vm123 = vmand %vm92, %vm108
    %vm124 = vmand %vm93, %vm109
    %vm125 = vmand %vm94, %vm110
    %vm126 = vmand %vm95, %vm111
    %vm127 = vmand %vm96, %vm112
    %vm128 = vmand %vm97, %vm113
    %vm129 = vmand %vm98, %vm114
    %v130 = vsel %vm115, 1, 0
    %v131 = vsel %vm116, 1, 0
    %v132 = vsel %vm117, 1, 0
    %v133 = vsel %vm118, 1, 0
    %v134 = vsel %vm119, 1, 0
    %v135 = vsel %vm120, 1, 0
    %v136 = vsel %vm121, 1, 0
    %v137 = vsel %vm122, 1, 0
    %v138 = vsel %vm123, 1, 0
    %v139 = vsel %vm124, 1, 0
    %v140 = vsel %vm125, 1, 0
    %v141 = vsel %vm126, 1, 0
    %v142 = vsel %vm127, 1, 0
    %v143 = vsel %vm128, 1, 0
    %v144 = vsel %vm129, 1, 0
    %v145 = vcvt.s32.f32 %v130
    %v146 = vcvt.s32.f32 %v131
    %v147 = vcvt.s32.f32 %v132
    %v148 = vcvt.s32.f32 %v133
    %v149 = vcvt.s32.f32 %v134
    %v150 = vcvt.s32.f32 %v135
    %v151 = vcvt.s32.f32 %v136
    %v152 = vcvt.s32.f32 %v137
    %v153 = vcvt.s32.f32 %v138
    %v154 = vcvt.s32.f32 %v139
    %v155 = vcvt.s32.f32 %v140
    %v156 = vcvt.s32.f32 %v141
    %v157 = vcvt.s32.f32 %v142
    %v158 = vcvt.s32.f32 %v143
    %v159 = vcvt.s32.f32 %v144
    %v160 = vadd.f32 %v62, 1e-06
    %v161 = vlog2.pop %v160
    %v162 = vmul.f32 %v161, 0.6931472
    %v163 = vmul.f32 %v63, %v162
    %vm164 = vcmask 982016
    %v166 = vsel %vm164, %v163, 0
    %168 = vmatprep.subr.mxu0 0.0
    %v169 = vand.u32 %v145, 4294901760
    %170 = vmatpush1.msra.mxu0 %v169
    %171 = vmatprep.subr.mxu0 0.0
    %v172 = vand.u32 %v146, 4294901760
    %173 = vmatpush1.msra.mxu0 %v172
    %174 = vmatprep.subr.mxu0 0.0
    %v175 = vand.u32 %v147, 4294901760
    %176 = vmatpush1.msra.mxu0 %v175
    %177 = vmatprep.subr.mxu0 0.0
    %v178 = vand.u32 %v148, 4294901760
    %179 = vmatpush1.msra.mxu0 %v178
    %180 = vmatprep.subr.mxu0 0.0
    %v181 = vand.u32 %v149, 4294901760
    %182 = vmatpush1.msra.mxu0 %v181
    %183 = vmatprep.subr.mxu0 0.0
    %v184 = vand.u32 %v150, 4294901760
    %185 = vmatpush1.msra.mxu0 %v184
    %186 = vmatprep.subr.mxu0 0.0
    %v187 = vand.u32 %v151, 4294901760
    %188 = vmatpush1.msra.mxu0 %v187
    %189 = vmatprep.subr.mxu0 0.0
    %v190 = vand.u32 %v152, 4294901760
    %191 = vmatpush1.msra.mxu0 %v190
    %192 = vmatprep.subr.mxu0 0.0
    %v193 = vand.u32 %v153, 4294901760
    %194 = vmatpush1.msra.mxu0 %v193
    %195 = vmatprep.subr.mxu0 0.0
    %v196 = vand.u32 %v154, 4294901760
    %197 = vmatpush1.msra.mxu0 %v196
    %198 = vmatprep.subr.mxu0 0.0
    %v199 = vand.u32 %v155, 4294901760
    %200 = vmatpush1.msra.mxu0 %v199
    %201 = vmatprep.subr.mxu0 0.0
    %v202 = vand.u32 %v156, 4294901760
    %203 = vmatpush1.msra.mxu0 %v202
    %204 = vmatprep.subr.mxu0 0.0
    %v205 = vand.u32 %v157, 4294901760
    %206 = vmatpush1.msra.mxu0 %v205
    %207 = vmatprep.subr.mxu0 0.0
    %v208 = vand.u32 %v158, 4294901760
    %209 = vmatpush1.msra.mxu0 %v208
    %210 = vmatprep.subr.mxu0 0.0
    %v211 = vand.u32 %v159, 4294901760
    %212 = vmatpush1.msra.mxu0 %v211
    %213 = vmatprep.subr.mxu0 0.0
    %214 = vmatpush1.msra.mxu0 0.0
    %215 = vmatprep.subr.mxu0 0.0
    %216 = vmatpush1.msra.mxu0 0.0
    %217 = vmatprep.subr.mxu0 0.0
    %218 = vmatpush1.msra.mxu0 0.0
    %219 = vmatprep.subr.mxu0 0.0
    %220 = vmatpush1.msra.mxu0 0.0
    %221 = vmatprep.subr.mxu0 0.0
    %222 = vmatpush1.msra.mxu0 0.0
    %223 = vmatprep.subr.mxu0 0.0
    %224 = vmatpush1.msra.mxu0 0.0
    %225 = vmatprep.subr.mxu0 0.0
    %226 = vmatpush1.msra.mxu0 0.0
    %227 = vmatprep.subr.mxu0 0.0
    %228 = vmatpush1.msra.mxu0 0.0
    %229 = vmatprep.subr.mxu0 0.0
    %230 = vmatpush1.msra.mxu0 0.0
    %231 = vmatprep.subr.mxu0 0.0
    %232 = vmatpush1.msra.mxu0 0.0
    %233 = vmatprep.subr.mxu0 0.0
    %234 = vmatpush1.msra.mxu0 0.0
    %235 = vmatprep.subr.mxu0 0.0
    %236 = vmatpush1.msra.mxu0 0.0
    %237 = vmatprep.subr.mxu0 0.0
    %238 = vmatpush1.msra.mxu0 0.0
    %239 = vmatprep.subr.mxu0 0.0
    %240 = vmatpush1.msra.mxu0 0.0
    %241 = vmatprep.subr.mxu0 0.0
    %242 = vmatpush1.msra.mxu0 0.0
    %243 = vmatprep.subr.mxu0 0.0
    %244 = vmatpush1.msra.mxu0 0.0
    %245 = vmatprep.subr.mxu0 0.0
    %246 = vmatpush1.msra.mxu0 0.0
    %247 = vmatprep.mubr.f32.mxu0 0.0
    %v248 = vand.u32 %v166, 4294901760
    %v249 = vsub.f32 %v166, %v248
    %v250 = vand.u32 %v249, 4294901760
    %v251 = vsub.f32 %v249, %v250
    %v252 = vand.u32 %v251, 4294901760
    %253 = vmatmul.mubr.f32.gmra.mrb[0].mxu0 %v252
    %v254 = vpop.f32.mrb[0].mxu0
    %v255 = vadd.f32 0.0, %v254
    %v256 = vpop.f32.mrb[0].mxu0
    %257 = vdwg.mxu0
    %258 = vmatprep.subr.mxu0 0.0
    %v259 = vand.u32 %v145, 4294901760
    %v260 = vsub.f32 %v145, %v259
    %v261 = vand.u32 %v260, 4294901760
    %v262 = vsub.f32 %v260, %v261
    %v263 = vand.u32 %v262, 4294901760
    %264 = vmatpush1.msra.mxu0 %v263
    %265 = vmatprep.subr.mxu0 0.0
    %v266 = vand.u32 %v146, 4294901760
    %v267 = vsub.f32 %v146, %v266
    %v268 = vand.u32 %v267, 4294901760
    %v269 = vsub.f32 %v267, %v268
    %v270 = vand.u32 %v269, 4294901760
    %271 = vmatpush1.msra.mxu0 %v270
    %272 = vmatprep.subr.mxu0 0.0
    %v273 = vand.u32 %v147, 4294901760
    %v274 = vsub.f32 %v147, %v273
    %v275 = vand.u32 %v274, 4294901760
    %v276 = vsub.f32 %v274, %v275
    %v277 = vand.u32 %v276, 4294901760
    %278 = vmatpush1.msra.mxu0 %v277
    %279 = vmatprep.subr.mxu0 0.0
    %v280 = vand.u32 %v148, 4294901760
    %v281 = vsub.f32 %v148, %v280
    %v282 = vand.u32 %v281, 4294901760
    %v283 = vsub.f32 %v281, %v282
    %v284 = vand.u32 %v283, 4294901760
    %285 = vmatpush1.msra.mxu0 %v284
    %286 = vmatprep.subr.mxu0 0.0
    %v287 = vand.u32 %v149, 4294901760
    %v288 = vsub.f32 %v149, %v287
    %v289 = vand.u32 %v288, 4294901760
    %v290 = vsub.f32 %v288, %v289
    %v291 = vand.u32 %v290, 4294901760
    %292 = vmatpush1.msra.mxu0 %v291
    %293 = vmatprep.subr.mxu0 0.0
    %v294 = vand.u32 %v150, 4294901760
    %v295 = vsub.f32 %v150, %v294
    %v296 = vand.u32 %v295, 4294901760
    %v297 = vsub.f32 %v295, %v296
    %v298 = vand.u32 %v297, 4294901760
    %299 = vmatpush1.msra.mxu0 %v298
    %300 = vmatprep.subr.mxu0 0.0
    %v301 = vand.u32 %v151, 4294901760
    %v302 = vsub.f32 %v151, %v301
    %v303 = vand.u32 %v302, 4294901760
    %v304 = vsub.f32 %v302, %v303
    %v305 = vand.u32 %v304, 4294901760
    %306 = vmatpush1.msra.mxu0 %v305
    %307 = vmatprep.subr.mxu0 0.0
    %v308 = vand.u32 %v152, 4294901760
    %v309 = vsub.f32 %v152, %v308
    %v310 = vand.u32 %v309, 4294901760
    %v311 = vsub.f32 %v309, %v310
    %v312 = vand.u32 %v311, 4294901760
    %313 = vmatpush1.msra.mxu0 %v312
    %314 = vmatprep.subr.mxu0 0.0
    %v315 = vand.u32 %v153, 4294901760
    %v316 = vsub.f32 %v153, %v315
    %v317 = vand.u32 %v316, 4294901760
    %v318 = vsub.f32 %v316, %v317
    %v319 = vand.u32 %v318, 4294901760
    %320 = vmatpush1.msra.mxu0 %v319
    %321 = vmatprep.subr.mxu0 0.0
    %v322 = vand.u32 %v154, 4294901760
    %v323 = vsub.f32 %v154, %v322
    %v324 = vand.u32 %v323, 4294901760
    %v325 = vsub.f32 %v323, %v324
    %v326 = vand.u32 %v325, 4294901760
    %327 = vmatpush1.msra.mxu0 %v326
    %328 = vmatprep.subr.mxu0 0.0
    %v329 = vand.u32 %v155, 4294901760
    %v330 = vsub.f32 %v155, %v329
    %v331 = vand.u32 %v330, 4294901760
    %v332 = vsub.f32 %v330, %v331
    %v333 = vand.u32 %v332, 4294901760
    %334 = vmatpush1.msra.mxu0 %v333
    %335 = vmatprep.subr.mxu0 0.0
    %v336 = vand.u32 %v156, 4294901760
    %v337 = vsub.f32 %v156, %v336
    %v338 = vand.u32 %v337, 4294901760
    %v339 = vsub.f32 %v337, %v338
    %v340 = vand.u32 %v339, 4294901760
    %341 = vmatpush1.msra.mxu0 %v340
    %342 = vmatprep.subr.mxu0 0.0
    %v343 = vand.u32 %v157, 4294901760
    %v344 = vsub.f32 %v157, %v343
    %v345 = vand.u32 %v344, 4294901760
    %v346 = vsub.f32 %v344, %v345
    %v347 = vand.u32 %v346, 4294901760
    %348 = vmatpush1.msra.mxu0 %v347
    %349 = vmatprep.subr.mxu0 0.0
    %v350 = vand.u32 %v158, 4294901760
    %v351 = vsub.f32 %v158, %v350
    %v352 = vand.u32 %v351, 4294901760
    %v353 = vsub.f32 %v351, %v352
    %v354 = vand.u32 %v353, 4294901760
    %355 = vmatpush1.msra.mxu0 %v354
    %356 = vmatprep.subr.mxu0 0.0
    %v357 = vand.u32 %v159, 4294901760
    %v358 = vsub.f32 %v159, %v357
    %v359 = vand.u32 %v358, 4294901760
    %v360 = vsub.f32 %v358, %v359
    %v361 = vand.u32 %v360, 4294901760
    %362 = vmatpush1.msra.mxu0 %v361
    %363 = vmatprep.subr.mxu0 0.0
    %364 = vmatpush1.msra.mxu0 0.0
    %365 = vmatprep.subr.mxu0 0.0
    %366 = vmatpush1.msra.mxu0 0.0
    %367 = vmatprep.subr.mxu0 0.0
    %368 = vmatpush1.msra.mxu0 0.0
    %369 = vmatprep.subr.mxu0 0.0
    %370 = vmatpush1.msra.mxu0 0.0
    %371 = vmatprep.subr.mxu0 0.0
    %372 = vmatpush1.msra.mxu0 0.0
    %373 = vmatprep.subr.mxu0 0.0
    %374 = vmatpush1.msra.mxu0 0.0
    %375 = vmatprep.subr.mxu0 0.0
    %376 = vmatpush1.msra.mxu0 0.0
    %377 = vmatprep.subr.mxu0 0.0
    %378 = vmatpush1.msra.mxu0 0.0
    %379 = vmatprep.subr.mxu0 0.0
    %380 = vmatpush1.msra.mxu0 0.0
    %381 = vmatprep.subr.mxu0 0.0
    %382 = vmatpush1.msra.mxu0 0.0
    %383 = vmatprep.subr.mxu0 0.0
    %384 = vmatpush1.msra.mxu0 0.0
    %385 = vmatprep.subr.mxu0 0.0
    %386 = vmatpush1.msra.mxu0 0.0
    %387 = vmatprep.subr.mxu0 0.0
    %388 = vmatpush1.msra.mxu0 0.0
    %389 = vmatprep.subr.mxu0 0.0
    %390 = vmatpush1.msra.mxu0 0.0
    %391 = vmatprep.subr.mxu0 0.0
    %392 = vmatpush1.msra.mxu0 0.0
    %393 = vmatprep.subr.mxu0 0.0
    %394 = vmatpush1.msra.mxu0 0.0
    %395 = vmatprep.subr.mxu0 0.0
    %396 = vmatpush1.msra.mxu0 0.0
    %397 = vmatprep.mubr.f32.mxu0 0.0
    %v398 = vand.u32 %v166, 4294901760
    %399 = vmatmul.mubr.f32.gmra.mrb[0].mxu0 %v398
    %v400 = vpop.f32.mrb[0].mxu0
    %v401 = vadd.f32 %v255, %v400
    %v402 = vpop.f32.mrb[0].mxu0
    %403 = vdwg.mxu0
    %404 = vmatprep.subr.mxu0 0.0
    %v405 = vand.u32 %v145, 4294901760
    %v406 = vsub.f32 %v145, %v405
    %407 = vmatpush1.msra.mxu0 %v406
    %408 = vmatprep.subr.mxu0 0.0
    %v409 = vand.u32 %v146, 4294901760
    %v410 = vsub.f32 %v146, %v409
    %411 = vmatpush1.msra.mxu0 %v410
    %412 = vmatprep.subr.mxu0 0.0
    %v413 = vand.u32 %v147, 4294901760
    %v414 = vsub.f32 %v147, %v413
    %415 = vmatpush1.msra.mxu0 %v414
    %416 = vmatprep.subr.mxu0 0.0
    %v417 = vand.u32 %v148, 4294901760
    %v418 = vsub.f32 %v148, %v417
    %419 = vmatpush1.msra.mxu0 %v418
    %420 = vmatprep.subr.mxu0 0.0
    %v421 = vand.u32 %v149, 4294901760
    %v422 = vsub.f32 %v149, %v421
    %423 = vmatpush1.msra.mxu0 %v422
    %424 = vmatprep.subr.mxu0 0.0
    %v425 = vand.u32 %v150, 4294901760
    %v426 = vsub.f32 %v150, %v425
    %427 = vmatpush1.msra.mxu0 %v426
    %428 = vmatprep.subr.mxu0 0.0
    %v429 = vand.u32 %v151, 4294901760
    %v430 = vsub.f32 %v151, %v429
    %431 = vmatpush1.msra.mxu0 %v430
    %432 = vmatprep.subr.mxu0 0.0
    %v433 = vand.u32 %v152, 4294901760
    %v434 = vsub.f32 %v152, %v433
    %435 = vmatpush1.msra.mxu0 %v434
    %436 = vmatprep.subr.mxu0 0.0
    %v437 = vand.u32 %v153, 4294901760
    %v438 = vsub.f32 %v153, %v437
    %439 = vmatpush1.msra.mxu0 %v438
    %440 = vmatprep.subr.mxu0 0.0
    %v441 = vand.u32 %v154, 4294901760
    %v442 = vsub.f32 %v154, %v441
    %443 = vmatpush1.msra.mxu0 %v442
    %444 = vmatprep.subr.mxu0 0.0
    %v445 = vand.u32 %v155, 4294901760
    %v446 = vsub.f32 %v155, %v445
    %447 = vmatpush1.msra.mxu0 %v446
    %448 = vmatprep.subr.mxu0 0.0
    %v449 = vand.u32 %v156, 4294901760
    %v450 = vsub.f32 %v156, %v449
    %451 = vmatpush1.msra.mxu0 %v450
    %452 = vmatprep.subr.mxu0 0.0
    %v453 = vand.u32 %v157, 4294901760
    %v454 = vsub.f32 %v157, %v453
    %455 = vmatpush1.msra.mxu0 %v454
    %456 = vmatprep.subr.mxu0 0.0
    %v457 = vand.u32 %v158, 4294901760
    %v458 = vsub.f32 %v158, %v457
    %459 = vmatpush1.msra.mxu0 %v458
    %460 = vmatprep.subr.mxu0 0.0
    %v461 = vand.u32 %v159, 4294901760
    %v462 = vsub.f32 %v159, %v461
    %463 = vmatpush1.msra.mxu0 %v462
    %464 = vmatprep.subr.mxu0 0.0
    %465 = vmatpush1.msra.mxu0 0.0
    %466 = vmatprep.subr.mxu0 0.0
    %467 = vmatpush1.msra.mxu0 0.0
    %468 = vmatprep.subr.mxu0 0.0
    %469 = vmatpush1.msra.mxu0 0.0
    %470 = vmatprep.subr.mxu0 0.0
    %471 = vmatpush1.msra.mxu0 0.0
    %472 = vmatprep.subr.mxu0 0.0
    %473 = vmatpush1.msra.mxu0 0.0
    %474 = vmatprep.subr.mxu0 0.0
    %475 = vmatpush1.msra.mxu0 0.0
    %476 = vmatprep.subr.mxu0 0.0
    %477 = vmatpush1.msra.mxu0 0.0
    %478 = vmatprep.subr.mxu0 0.0
    %479 = vmatpush1.msra.mxu0 0.0
    %480 = vmatprep.subr.mxu0 0.0
    %481 = vmatpush1.msra.mxu0 0.0
    %482 = vmatprep.subr.mxu0 0.0
    %483 = vmatpush1.msra.mxu0 0.0
    %484 = vmatprep.subr.mxu0 0.0
    %485 = vmatpush1.msra.mxu0 0.0
    %486 = vmatprep.subr.mxu0 0.0
    %487 = vmatpush1.msra.mxu0 0.0
    %488 = vmatprep.subr.mxu0 0.0
    %489 = vmatpush1.msra.mxu0 0.0
    %490 = vmatprep.subr.mxu0 0.0
    %491 = vmatpush1.msra.mxu0 0.0
    %492 = vmatprep.subr.mxu0 0.0
    %493 = vmatpush1.msra.mxu0 0.0
    %494 = vmatprep.subr.mxu0 0.0
    %495 = vmatpush1.msra.mxu0 0.0
    %496 = vmatprep.subr.mxu0 0.0
    %497 = vmatpush1.msra.mxu0 0.0
    %498 = vmatprep.mubr.f32.mxu0 0.0
    %v499 = vand.u32 %v166, 4294901760
    %v500 = vsub.f32 %v166, %v499
    %501 = vmatmul.mubr.f32.gmra.mrb[0].mxu0 %v500
    %v502 = vpop.f32.mrb[0].mxu0
    %v503 = vadd.f32 %v401, %v502
    %v504 = vpop.f32.mrb[0].mxu0
    %505 = vdwg.mxu0
    %506 = vmatprep.subr.mxu0 0.0
    %v507 = vand.u32 %v145, 4294901760
    %508 = vmatpush1.msra.mxu0 %v507
    %509 = vmatprep.subr.mxu0 0.0
    %v510 = vand.u32 %v146, 4294901760
    %511 = vmatpush1.msra.mxu0 %v510
    %512 = vmatprep.subr.mxu0 0.0
    %v513 = vand.u32 %v147, 4294901760
    %514 = vmatpush1.msra.mxu0 %v513
    %515 = vmatprep.subr.mxu0 0.0
    %v516 = vand.u32 %v148, 4294901760
    %517 = vmatpush1.msra.mxu0 %v516
    %518 = vmatprep.subr.mxu0 0.0
    %v519 = vand.u32 %v149, 4294901760
    %520 = vmatpush1.msra.mxu0 %v519
    %521 = vmatprep.subr.mxu0 0.0
    %v522 = vand.u32 %v150, 4294901760
    %523 = vmatpush1.msra.mxu0 %v522
    %524 = vmatprep.subr.mxu0 0.0
    %v525 = vand.u32 %v151, 4294901760
    %526 = vmatpush1.msra.mxu0 %v525
    %527 = vmatprep.subr.mxu0 0.0
    %v528 = vand.u32 %v152, 4294901760
    %529 = vmatpush1.msra.mxu0 %v528
    %530 = vmatprep.subr.mxu0 0.0
    %v531 = vand.u32 %v153, 4294901760
    %532 = vmatpush1.msra.mxu0 %v531
    %533 = vmatprep.subr.mxu0 0.0
    %v534 = vand.u32 %v154, 4294901760
    %535 = vmatpush1.msra.mxu0 %v534
    %536 = vmatprep.subr.mxu0 0.0
    %v537 = vand.u32 %v155, 4294901760
    %538 = vmatpush1.msra.mxu0 %v537
    %539 = vmatprep.subr.mxu0 0.0
    %v540 = vand.u32 %v156, 4294901760
    %541 = vmatpush1.msra.mxu0 %v540
    %542 = vmatprep.subr.mxu0 0.0
    %v543 = vand.u32 %v157, 4294901760
    %544 = vmatpush1.msra.mxu0 %v543
    %545 = vmatprep.subr.mxu0 0.0
    %v546 = vand.u32 %v158, 4294901760
    %547 = vmatpush1.msra.mxu0 %v546
    %548 = vmatprep.subr.mxu0 0.0
    %v549 = vand.u32 %v159, 4294901760
    %550 = vmatpush1.msra.mxu0 %v549
    %551 = vmatprep.subr.mxu0 0.0
    %552 = vmatpush1.msra.mxu0 0.0
    %553 = vmatprep.subr.mxu0 0.0
    %554 = vmatpush1.msra.mxu0 0.0
    %555 = vmatprep.subr.mxu0 0.0
    %556 = vmatpush1.msra.mxu0 0.0
    %557 = vmatprep.subr.mxu0 0.0
    %558 = vmatpush1.msra.mxu0 0.0
    %559 = vmatprep.subr.mxu0 0.0
    %560 = vmatpush1.msra.mxu0 0.0
    %561 = vmatprep.subr.mxu0 0.0
    %562 = vmatpush1.msra.mxu0 0.0
    %563 = vmatprep.subr.mxu0 0.0
    %564 = vmatpush1.msra.mxu0 0.0
    %565 = vmatprep.subr.mxu0 0.0
    %566 = vmatpush1.msra.mxu0 0.0
    %567 = vmatprep.subr.mxu0 0.0
    %568 = vmatpush1.msra.mxu0 0.0
    %569 = vmatprep.subr.mxu0 0.0
    %570 = vmatpush1.msra.mxu0 0.0
    %571 = vmatprep.subr.mxu0 0.0
    %572 = vmatpush1.msra.mxu0 0.0
    %573 = vmatprep.subr.mxu0 0.0
    %574 = vmatpush1.msra.mxu0 0.0
    %575 = vmatprep.subr.mxu0 0.0
    %576 = vmatpush1.msra.mxu0 0.0
    %577 = vmatprep.subr.mxu0 0.0
    %578 = vmatpush1.msra.mxu0 0.0
    %579 = vmatprep.subr.mxu0 0.0
    %580 = vmatpush1.msra.mxu0 0.0
    %581 = vmatprep.subr.mxu0 0.0
    %582 = vmatpush1.msra.mxu0 0.0
    %583 = vmatprep.subr.mxu0 0.0
    %584 = vmatpush1.msra.mxu0 0.0
    %585 = vmatprep.mubr.f32.mxu0 0.0
    %v586 = vand.u32 %v166, 4294901760
    %v587 = vsub.f32 %v166, %v586
    %v588 = vand.u32 %v587, 4294901760
    %589 = vmatmul.mubr.f32.gmra.mrb[0].mxu0 %v588
    %v590 = vpop.f32.mrb[0].mxu0
    %v591 = vadd.f32 %v503, %v590
    %v592 = vpop.f32.mrb[0].mxu0
    %593 = vdwg.mxu0
    %594 = vmatprep.subr.mxu0 0.0
    %v595 = vand.u32 %v145, 4294901760
    %v596 = vsub.f32 %v145, %v595
    %v597 = vand.u32 %v596, 4294901760
    %598 = vmatpush1.msra.mxu0 %v597
    %599 = vmatprep.subr.mxu0 0.0
    %v600 = vand.u32 %v146, 4294901760
    %v601 = vsub.f32 %v146, %v600
    %v602 = vand.u32 %v601, 4294901760
    %603 = vmatpush1.msra.mxu0 %v602
    %604 = vmatprep.subr.mxu0 0.0
    %v605 = vand.u32 %v147, 4294901760
    %v606 = vsub.f32 %v147, %v605
    %v607 = vand.u32 %v606, 4294901760
    %608 = vmatpush1.msra.mxu0 %v607
    %609 = vmatprep.subr.mxu0 0.0
    %v610 = vand.u32 %v148, 4294901760
    %v611 = vsub.f32 %v148, %v610
    %v612 = vand.u32 %v611, 4294901760
    %613 = vmatpush1.msra.mxu0 %v612
    %614 = vmatprep.subr.mxu0 0.0
    %v615 = vand.u32 %v149, 4294901760
    %v616 = vsub.f32 %v149, %v615
    %v617 = vand.u32 %v616, 4294901760
    %618 = vmatpush1.msra.mxu0 %v617
    %619 = vmatprep.subr.mxu0 0.0
    %v620 = vand.u32 %v150, 4294901760
    %v621 = vsub.f32 %v150, %v620
    %v622 = vand.u32 %v621, 4294901760
    %623 = vmatpush1.msra.mxu0 %v622
    %624 = vmatprep.subr.mxu0 0.0
    %v625 = vand.u32 %v151, 4294901760
    %v626 = vsub.f32 %v151, %v625
    %v627 = vand.u32 %v626, 4294901760
    %628 = vmatpush1.msra.mxu0 %v627
    %629 = vmatprep.subr.mxu0 0.0
    %v630 = vand.u32 %v152, 4294901760
    %v631 = vsub.f32 %v152, %v630
    %v632 = vand.u32 %v631, 4294901760
    %633 = vmatpush1.msra.mxu0 %v632
    %634 = vmatprep.subr.mxu0 0.0
    %v635 = vand.u32 %v153, 4294901760
    %v636 = vsub.f32 %v153, %v635
    %v637 = vand.u32 %v636, 4294901760
    %638 = vmatpush1.msra.mxu0 %v637
    %639 = vmatprep.subr.mxu0 0.0
    %v640 = vand.u32 %v154, 4294901760
    %v641 = vsub.f32 %v154, %v640
    %v642 = vand.u32 %v641, 4294901760
    %643 = vmatpush1.msra.mxu0 %v642
    %644 = vmatprep.subr.mxu0 0.0
    %v645 = vand.u32 %v155, 4294901760
    %v646 = vsub.f32 %v155, %v645
    %v647 = vand.u32 %v646, 4294901760
    %648 = vmatpush1.msra.mxu0 %v647
    %649 = vmatprep.subr.mxu0 0.0
    %v650 = vand.u32 %v156, 4294901760
    %v651 = vsub.f32 %v156, %v650
    %v652 = vand.u32 %v651, 4294901760
    %653 = vmatpush1.msra.mxu0 %v652
    %654 = vmatprep.subr.mxu0 0.0
    %v655 = vand.u32 %v157, 4294901760
    %v656 = vsub.f32 %v157, %v655
    %v657 = vand.u32 %v656, 4294901760
    %658 = vmatpush1.msra.mxu0 %v657
    %659 = vmatprep.subr.mxu0 0.0
    %v660 = vand.u32 %v158, 4294901760
    %v661 = vsub.f32 %v158, %v660
    %v662 = vand.u32 %v661, 4294901760
    %663 = vmatpush1.msra.mxu0 %v662
    %664 = vmatprep.subr.mxu0 0.0
    %v665 = vand.u32 %v159, 4294901760
    %v666 = vsub.f32 %v159, %v665
    %v667 = vand.u32 %v666, 4294901760
    %668 = vmatpush1.msra.mxu0 %v667
    %669 = vmatprep.subr.mxu0 0.0
    %670 = vmatpush1.msra.mxu0 0.0
    %671 = vmatprep.subr.mxu0 0.0
    %672 = vmatpush1.msra.mxu0 0.0
    %673 = vmatprep.subr.mxu0 0.0
    %674 = vmatpush1.msra.mxu0 0.0
    %675 = vmatprep.subr.mxu0 0.0
    %676 = vmatpush1.msra.mxu0 0.0
    %677 = vmatprep.subr.mxu0 0.0
    %678 = vmatpush1.msra.mxu0 0.0
    %679 = vmatprep.subr.mxu0 0.0
    %680 = vmatpush1.msra.mxu0 0.0
    %681 = vmatprep.subr.mxu0 0.0
    %682 = vmatpush1.msra.mxu0 0.0
    %683 = vmatprep.subr.mxu0 0.0
    %684 = vmatpush1.msra.mxu0 0.0
    %685 = vmatprep.subr.mxu0 0.0
    %686 = vmatpush1.msra.mxu0 0.0
    %687 = vmatprep.subr.mxu0 0.0
    %688 = vmatpush1.msra.mxu0 0.0
    %689 = vmatprep.subr.mxu0 0.0
    %690 = vmatpush1.msra.mxu0 0.0
    %691 = vmatprep.subr.mxu0 0.0
    %692 = vmatpush1.msra.mxu0 0.0
    %693 = vmatprep.subr.mxu0 0.0
    %694 = vmatpush1.msra.mxu0 0.0
    %695 = vmatprep.subr.mxu0 0.0
    %696 = vmatpush1.msra.mxu0 0.0
    %697 = vmatprep.subr.mxu0 0.0
    %698 = vmatpush1.msra.mxu0 0.0
    %699 = vmatprep.subr.mxu0 0.0
    %700 = vmatpush1.msra.mxu0 0.0
    %701 = vmatprep.subr.mxu0 0.0
    %702 = vmatpush1.msra.mxu0 0.0
    %703 = vmatprep.mubr.f32.mxu0 0.0
    %v704 = vand.u32 %v166, 4294901760
    %705 = vmatmul.mubr.f32.gmra.mrb[0].mxu0 %v704
    %v706 = vpop.f32.mrb[0].mxu0
    %v707 = vadd.f32 %v591, %v706
    %v708 = vpop.f32.mrb[0].mxu0
    %709 = vdwg.mxu0
    %710 = vmatprep.subr.mxu0 0.0
    %v711 = vand.u32 %v145, 4294901760
    %712 = vmatpush1.msra.mxu0 %v711
    %713 = vmatprep.subr.mxu0 0.0
    %v714 = vand.u32 %v146, 4294901760
    %715 = vmatpush1.msra.mxu0 %v714
    %716 = vmatprep.subr.mxu0 0.0
    %v717 = vand.u32 %v147, 4294901760
    %718 = vmatpush1.msra.mxu0 %v717
    %719 = vmatprep.subr.mxu0 0.0
    %v720 = vand.u32 %v148, 4294901760
    %721 = vmatpush1.msra.mxu0 %v720
    %722 = vmatprep.subr.mxu0 0.0
    %v723 = vand.u32 %v149, 4294901760
    %724 = vmatpush1.msra.mxu0 %v723
    %725 = vmatprep.subr.mxu0 0.0
    %v726 = vand.u32 %v150, 4294901760
    %727 = vmatpush1.msra.mxu0 %v726
    %728 = vmatprep.subr.mxu0 0.0
    %v729 = vand.u32 %v151, 4294901760
    %730 = vmatpush1.msra.mxu0 %v729
    %731 = vmatprep.subr.mxu0 0.0
    %v732 = vand.u32 %v152, 4294901760
    %733 = vmatpush1.msra.mxu0 %v732
    %734 = vmatprep.subr.mxu0 0.0
    %v735 = vand.u32 %v153, 4294901760
    %736 = vmatpush1.msra.mxu0 %v735
    %737 = vmatprep.subr.mxu0 0.0
    %v738 = vand.u32 %v154, 4294901760
    %739 = vmatpush1.msra.mxu0 %v738
    %740 = vmatprep.subr.mxu0 0.0
    %v741 = vand.u32 %v155, 4294901760
    %742 = vmatpush1.msra.mxu0 %v741
    %743 = vmatprep.subr.mxu0 0.0
    %v744 = vand.u32 %v156, 4294901760
    %745 = vmatpush1.msra.mxu0 %v744
    %746 = vmatprep.subr.mxu0 0.0
    %v747 = vand.u32 %v157, 4294901760
    %748 = vmatpush1.msra.mxu0 %v747
    %749 = vmatprep.subr.mxu0 0.0
    %v750 = vand.u32 %v158, 4294901760
    %751 = vmatpush1.msra.mxu0 %v750
    %752 = vmatprep.subr.mxu0 0.0
    %v753 = vand.u32 %v159, 4294901760
    %754 = vmatpush1.msra.mxu0 %v753
    %755 = vmatprep.subr.mxu0 0.0
    %756 = vmatpush1.msra.mxu0 0.0
    %757 = vmatprep.subr.mxu0 0.0
    %758 = vmatpush1.msra.mxu0 0.0
    %759 = vmatprep.subr.mxu0 0.0
    %760 = vmatpush1.msra.mxu0 0.0
    %761 = vmatprep.subr.mxu0 0.0
    %762 = vmatpush1.msra.mxu0 0.0
    %763 = vmatprep.subr.mxu0 0.0
    %764 = vmatpush1.msra.mxu0 0.0
    %765 = vmatprep.subr.mxu0 0.0
    %766 = vmatpush1.msra.mxu0 0.0
    %767 = vmatprep.subr.mxu0 0.0
    %768 = vmatpush1.msra.mxu0 0.0
    %769 = vmatprep.subr.mxu0 0.0
    %770 = vmatpush1.msra.mxu0 0.0
    %771 = vmatprep.subr.mxu0 0.0
    %772 = vmatpush1.msra.mxu0 0.0
    %773 = vmatprep.subr.mxu0 0.0
    %774 = vmatpush1.msra.mxu0 0.0
    %775 = vmatprep.subr.mxu0 0.0
    %776 = vmatpush1.msra.mxu0 0.0
    %777 = vmatprep.subr.mxu0 0.0
    %778 = vmatpush1.msra.mxu0 0.0
    %779 = vmatprep.subr.mxu0 0.0
    %780 = vmatpush1.msra.mxu0 0.0
    %781 = vmatprep.subr.mxu0 0.0
    %782 = vmatpush1.msra.mxu0 0.0
    %783 = vmatprep.subr.mxu0 0.0
    %784 = vmatpush1.msra.mxu0 0.0
    %785 = vmatprep.subr.mxu0 0.0
    %786 = vmatpush1.msra.mxu0 0.0
    %787 = vmatprep.subr.mxu0 0.0
    %788 = vmatpush1.msra.mxu0 0.0
    %789 = vmatprep.mubr.f32.mxu0 0.0
    %v790 = vand.u32 %v166, 4294901760
    %791 = vmatmul.mubr.f32.gmra.mrb[0].mxu0 %v790
    %v792 = vpop.f32.mrb[0].mxu0
    %v793 = vadd.f32 %v707, %v792
    %v794 = vpop.f32.mrb[0].mxu0
    %795 = vdwg.mxu0
    %v796 = vmul.f32 %v793, %v64
    %s797 = sld [smem:[#allocation2]]
    %vm798 = vcmask 39936
    %v799 = vsel %vm798, %v796, 0.0
    %800 = vadd.xlane.f32.xlu0 %v799
    %v801 = vpop.xlane.xlu0 %800
    %v802 = vrot.slane %v801, 4
    %v803 = vadd.f32 %v801, %v802
    %v804 = vrot.slane %v803, 2
    %v805 = vadd.f32 %v803, %v804
    %v806 = vrot.slane %v805, 1
    %v807 = vadd.f32 %v805, %v806
    %s808 = vtos %v807
    %s809 = ssub.f32 0.0, %s808
    %s810 = sadd.f32 %s797, %s809
    %s811 = scalar_lea.smem [#allocation2], 0
    %812 = sst [smem:[%s811]] %s810
    %s813 = sld [smem:[#allocation2 + $0x1]]
    %vm814 = vcmp.ne.f32.partialorder %v64, 0.0
    %v815 = vsel %vm814, 1, 0
    %v816 = vcvt.s32.f32 %v815
    %v817 = vsel %vm798, %v816, 0.0
    %818 = vadd.xlane.f32.xlu0 %v817
    %v819 = vpop.xlane.xlu0 %818
    %v820 = vrot.slane %v819, 4
    %v821 = vadd.f32 %v819, %v820
    %v822 = vrot.slane %v821, 2
    %v823 = vadd.f32 %v821, %v822
    %v824 = vrot.slane %v823, 1
    %v825 = vadd.f32 %v823, %v824
    %s826 = vtos %v825
    %s827 = sadd.f32 %s813, %s826
    %s828 = scalar_lea.smem [#allocation2], 1
    %829 = sst [smem:[%s828]] %s827
    // Predicated region
    $region30: #{tpu_custom_call.1} parent=1 // pred_check
      %p830 = pneg %p50
    $region31: #{tpu_custom_call.1} parent=1 // pred_check_branch
      %832 = sbr.rel (%p830) target = $region33
    $region32: #{tpu_custom_call.1} parent=1 // pred_region
      %s833 = sld [smem:[#allocation2]]
      %s834 = sld [smem:[#allocation2 + $0x1]]
      %v835 = vstv %s834
      %v836 = vrcp.pop %v835
      %s837 = vtos %v836
      %s838 = smul.f32 %s833, %s837
      %s839 = scalar_lea.smem [#allocation9], 0
      %840 = sst [smem:[%s839]] %s838
    $region33: #{tpu_custom_call.1} parent=1 // pred_fallthru
      _
    // Predicated region
    $region34: #{tpu_custom_call.1} parent=1 // pred_check
      _
    $region35: #{tpu_custom_call.1} parent=1 // pred_check_branch
      %842 = sbr.rel (0) target = $region37
    $region36: #{tpu_custom_call.1} parent=1 // pred_region
      %s844 = ssub.s32 16, 16
      %845 = vsyncadd [#allocation5], %s844
      %848 = dma.smem_to_hbm [#allocation9], 16, %s3, [#allocation5]
    $region37: #{tpu_custom_call.1} parent=1 // pred_fallthru
      _
    // Predicated region
    $region38: #{tpu_custom_call.1} parent=1 // pred_check
      _
    $region39: #{tpu_custom_call.1} parent=1 // pred_check_branch
      %850 = sbr.rel (0) target = $region41
    $region40: #{tpu_custom_call.1} parent=1 // pred_region
      %851 = dma.done [#allocation5], 16
    $region41: #{tpu_custom_call.1} parent=1 // pred_fallthru
      _
    %852 = sfence
    %853 = vsyncpa [#allocation4], 1
    %854 = vsyncpa [#allocation7], 1
    %855 = vsyncpa [#allocation5], 1

</llo_original>
